<compile_context>
chip_gen: v7x
topology: tpu7x:2x2x1
jax: 0.10.0
libtpu: 0.0.40
codegen_flags: <defaults>
</compile_context>

<pallas_src>
import functools

import jax
import jax.numpy as jnp
from jax.experimental import pallas as pl
from jax.experimental.pallas import tpu as pltpu

LN_EPS = 1e-5                 # PyTorch nn.LayerNorm default
MAX_TILE_N = 512              # rows gathered + normalized per grid step
MIN_ROWS_PER_CORE = 128       # ensure >= 2 grid steps when this much work exists
TILE_VMEM_BUDGET = 8 << 20    # cap for per-tile buffers (rows scratch + 2x out)


def _round_up(x, m):
    return ((x + m - 1) // m) * m


def _cdiv(a, b):
    return -(-a // b)


def _vmem_capacity_bytes():
    try:
        return int(pltpu.get_tpu_info().vmem_capacity_bytes)
    except Exception:
        return 64 << 20       # conservative fallback (v7x per-core VMEM)


def _for_each_row(tile_n, body):
    """Run body(r) for r in [0, tile_n).  Fully unrolled for small tiles
    (descriptor/address math overlaps); partially unrolled fori_loop otherwise."""
    if tile_n <= 64:
        for r in range(tile_n):
            body(r)
    else:
        def wrapped(r, carry):
            body(r)
            return carry
        jax.lax.fori_loop(0, tile_n, wrapped, 0, unroll=8)


def _masked_layernorm(x, gamma, beta, true_h):
    """LayerNorm over the lane-padded last dim; padded lanes (zeros in the
    table) are excluded from the centered variance via a lane mask."""
    inv_h = 1.0 / float(true_h)
    mean = jnp.sum(x, axis=-1, keepdims=True) * inv_h          # pad lanes are 0
    lane = jax.lax.broadcasted_iota(jnp.int32, x.shape, x.ndim - 1)
    xc = jnp.where(lane < true_h, x - mean, 0.0)
    var = jnp.sum(xc * xc, axis=-1, keepdims=True) * inv_h
    return xc * jax.lax.rsqrt(var + LN_EPS) * gamma + beta


# --------------------------------------------------------------------------
# Fast path: whole table resident in VMEM, gather = dynamic vector loads.
# --------------------------------------------------------------------------
def _resident_gather_ln_kernel(ids_ref, table_ref, gamma_ref, beta_ref,
                               out_ref, rows_ref, *, tile_n, true_h):
    base = pl.program_id(0) * tile_n

    def gather_row(r):
        idx = ids_ref[base + r]
        rows_ref[pl.ds(r, 1), :] = table_ref[pl.ds(idx, 1), :]

    _for_each_row(tile_n, gather_row)

    out_ref[...] = _masked_layernorm(rows_ref[...], gamma_ref[...],
                                     beta_ref[...], true_h)


# --------------------------------------------------------------------------
# Fallback path: table stays in HBM, per-row DMA gather with one shared
# semaphore per slot, a single whole-tile wait, and cross-step double buffer.
# --------------------------------------------------------------------------
def _hbm_gather_ln_kernel(ids_ref, table_hbm, gamma_ref, beta_ref,
                          out_ref, rows_ref, sems, *, tile_n, true_h):
    step = pl.program_id(0)
    num_steps = pl.num_programs(0)
    slot = step % 2

    def issue_tile(tile_idx, slot_idx):
        base = tile_idx * tile_n

        def issue_row(r):
            idx = ids_ref[base + r]
            pltpu.make_async_copy(
                table_hbm.at[pl.ds(idx, 1), :],
                rows_ref.at[slot_idx, pl.ds(r, 1), :],
                sems.at[slot_idx],
            ).start()

        _for_each_row(tile_n, issue_row)

    # Prime the pipeline with this step's own tile on the first step.
    @pl.when(step == 0)
    def _():
        issue_tile(step, slot)

    # Prefetch the next tile's rows into the other slot before waiting
    # (ids are already in SMEM via scalar prefetch).
    @pl.when(step + 1 < num_steps)
    def _():
        issue_tile(step + 1, 1 - slot)

    # Single whole-tile wait on the shared semaphore: this descriptor's byte
    # count (tile_n * H_pad * 4) equals the sum of the per-row copies above.
    pltpu.make_async_copy(rows_ref.at[slot], rows_ref.at[slot],
                          sems.at[slot]).wait()

    out_ref[...] = _masked_layernorm(rows_ref[slot], gamma_ref[...],
                                     beta_ref[...], true_h)


# --------------------------------------------------------------------------
# Wrapper
# --------------------------------------------------------------------------
@functools.partial(
    jax.jit,
    static_argnames=("proc_offset", "visit_index", "true_h", "num_valid_rows",
                     "use_resident", "vmem_cap"))
def _fused_embed_layernorm(dx_ids, proc_ids, table, gamma, beta, *,
                           proc_offset, visit_index, true_h, num_valid_rows,
                           use_resident, vmem_cap):
    """Fused dx+proc+visit embedding gather + LayerNorm.

    Returns (N, true_h) f32 with N = B*L_dx + B*L_proc + 1; the trailing row
    is LayerNorm(visit_table[0]).
    """
    v_pad, h_pad = table.shape

    ids = jnp.concatenate([
        dx_ids.reshape(-1).astype(jnp.int32),
        proc_ids.reshape(-1).astype(jnp.int32) + jnp.int32(proc_offset),
        jnp.full((1,), visit_index, dtype=jnp.int32),
    ])
    # Gathers have no runtime bounds check on TPU -> clamp explicitly.
    ids = jnp.clip(ids, 0, num_valid_rows - 1)
    n = int(ids.shape[0])

    # ---- row-tile size ----------------------------------------------------
    tile_n = _round_up(min(n, MAX_TILE_N), 8)
    # Keep >= 2 grid steps when there is enough work so a "parallel" axis can
    # actually split across v7x's two TensorCores.
    if n >= 2 * MIN_ROWS_PER_CORE:
        tile_n = min(tile_n, _round_up(_cdiv(n, 2), 8))
    # Cap per-tile VMEM (rows scratch + double-buffered output tiles).
    max_tile_by_vmem = max(8, (TILE_VMEM_BUDGET // (4 * h_pad * 4)) // 8 * 8)
    tile_n = max(8, min(tile_n, max_tile_by_vmem))

    n_pad = _round_up(n, tile_n)
    ids = jnp.pad(ids, (0, n_pad - n))       # padded ids gather row 0 (discarded)
    grid = (n_pad // tile_n,)

    # ---- VMEM limit (v5e default scoped limit is only 16 MiB) --------------
    tile_bytes = tile_n * h_pad * 4
    if use_resident:
        table_vmem = 2 * v_pad * h_pad * 4   # block may be double-buffered
        rows_bytes = tile_bytes
    else:
        table_vmem = 0
        rows_bytes = 2 * tile_bytes          # double-buffered row scratch
    need = table_vmem + 2 * tile_bytes + rows_bytes + 4 * h_pad * 4 + (1 << 20)
    vmem_limit = int(min(max(need, 32 << 20), int(0.9 * vmem_cap)))
    vmem_limit = max(vmem_limit, need)

    cost = pl.CostEstimate(
        flops=10 * n_pad * h_pad,
        transcendentals=n_pad,
        bytes_accessed=(2 * n_pad + v_pad) * h_pad * 4,
    )

    if use_resident:
        kernel = functools.partial(_resident_gather_ln_kernel,
                                   tile_n=tile_n, true_h=true_h)
        grid_spec = pltpu.PrefetchScalarGridSpec(
            num_scalar_prefetch=1,
            grid=grid,
            in_specs=[
                # Full-block spec with a constant index_map -> the table is
                # copied HBM->VMEM once and stays resident.
                pl.BlockSpec((v_pad, h_pad), lambda i, ids_ref: (0, 0)),
                pl.BlockSpec((1, h_pad), lambda i, ids_ref: (0, 0)),   # gamma
                pl.BlockSpec((1, h_pad), lambda i, ids_ref: (0, 0)),   # beta
            ],
            out_specs=pl.BlockSpec((tile_n, h_pad), lambda i, ids_ref: (i, 0)),
            scratch_shapes=[pltpu.VMEM((tile_n, h_pad), jnp.float32)],
        )
        dim_sem = ("parallel",)              # row tiles are independent
    else:
        kernel = functools.partial(_hbm_gather_ln_kernel,
                                   tile_n=tile_n, true_h=true_h)
        grid_spec = pltpu.PrefetchScalarGridSpec(
            num_scalar_prefetch=1,
            grid=grid,
            in_specs=[
                pl.BlockSpec(memory_space=pl.ANY),                     # table in HBM
                pl.BlockSpec((1, h_pad), lambda i, ids_ref: (0, 0)),   # gamma
                pl.BlockSpec((1, h_pad), lambda i, ids_ref: (0, 0)),   # beta
            ],
            out_specs=pl.BlockSpec((tile_n, h_pad), lambda i, ids_ref: (i, 0)),
            scratch_shapes=[
                pltpu.VMEM((2, tile_n, h_pad), jnp.float32),           # double buffer
                pltpu.SemaphoreType.DMA((2,)),                         # one sem per slot
            ],
        )
        # Cross-step DMA prefetch chain -> steps must run in order on one core.
        dim_sem = ("arbitrary",)

    out = pl.pallas_call(
        kernel,
        out_shape=jax.ShapeDtypeStruct((n_pad, h_pad), jnp.float32),
        grid_spec=grid_spec,
        compiler_params=pltpu.CompilerParams(
            dimension_semantics=dim_sem,
            vmem_limit_bytes=vmem_limit,
        ),
        cost_estimate=cost,
    )(ids, table, gamma, beta)
    return out[:n, :true_h]


def prepare_params(params, *, force_hbm_path=False):
    """One-time parameter preparation (hoisted out of the forward pass)."""
    dx = params["dx_table"].astype(jnp.float32)
    proc = params["proc_table"].astype(jnp.float32)
    visit = params["visit_table"].astype(jnp.float32)
    h = int(dx.shape[1])
    h_pad = _round_up(h, 128)   # lane-dense layout: full-lane stores, >=512B rows

    table = jnp.concatenate([dx, proc, visit], axis=0)
    v_total = int(table.shape[0])
    v_pad = _round_up(v_total, 8)
    table = jnp.pad(table, ((0, v_pad - v_total), (0, h_pad - h)))

    gamma = jnp.pad(params["ln_gamma"].astype(jnp.float32),
                    (0, h_pad - h)).reshape(1, h_pad)
    beta = jnp.pad(params["ln_beta"].astype(jnp.float32),
                   (0, h_pad - h)).reshape(1, h_pad)

    vmem_cap = _vmem_capacity_bytes()
    table_bytes = int(table.size) * 4
    # Generation-aware resident-table threshold; the full-block table may be
    # double-buffered by the pipeline, so count it twice (~12 MiB table on
    # v7x's 64 MiB VMEM, ~24 MiB on 128 MiB v5e/v6e parts).
    use_resident = (not force_hbm_path) and (2 * table_bytes <= int(0.375 * vmem_cap))

    return {
        "table": table,
        "gamma": gamma,
        "beta": beta,
        "proc_offset": int(dx.shape[0]),
        "visit_index": int(dx.shape[0] + proc.shape[0]),
        "num_valid_rows": v_total,
        "hidden": h,
        "use_resident": use_resident,
        "vmem_cap": vmem_cap,
    }


def feature_embedder_forward(features, prepared, feature_keys):
    """Mirrors FeatureEmbedder.forward (eval mode)."""
    batch = features[feature_keys[0]].shape[0]
    dx_ids = features["dx_ints"]
    proc_ids = features["proc_ints"]
    b, l_dx = dx_ids.shape
    _, l_proc = proc_ids.shape
    h = prepared["hidden"]

    fused = _fused_embed_layernorm(
        dx_ids, proc_ids,
        prepared["table"], prepared["gamma"], prepared["beta"],
        proc_offset=prepared["proc_offset"],
        visit_index=prepared["visit_index"],
        true_h=h,
        num_valid_rows=prepared["num_valid_rows"],
        use_resident=prepared["use_resident"],
        vmem_cap=prepared["vmem_cap"])

    n_dx = b * l_dx
    n_proc = b * l_proc
    embeddings = {
        "dx_ints": fused[:n_dx].reshape(b, l_dx, h),
        "proc_ints": fused[n_dx:n_dx + n_proc].reshape(b, l_proc, h),
        # LayerNorm(visit_table[0]) is batch-independent -> broadcast.
        "visit": jnp.broadcast_to(fused[n_dx + n_proc][None, None, :],
                                  (batch, 1, h)),
    }
    masks = {"visit": jnp.ones((batch, 1), dtype=jnp.float32)}
    # Dropout: identity in eval mode.
    return embeddings, masks


def _reference_embed_layernorm(ids, table, gamma, beta):
    emb = jnp.take(table, ids, axis=0).astype(jnp.float32)
    mean = jnp.mean(emb, axis=-1, keepdims=True)
    var = jnp.mean((emb - mean) ** 2, axis=-1, keepdims=True)
    return (emb - mean) * jax.lax.rsqrt(var + LN_EPS) * gamma + beta


if __name__ == "__main__":
    # Small, deterministic configuration.
    batch = 2
    hidden = 32
    vocab_sizes = {"dx_ints": 30, "proc_ints": 20}
    max_dx_len, max_proc_len = 8, 6
    feature_keys = ["dx_ints", "proc_ints"]

    key = jax.random.PRNGKey(0)
    k_dx, k_proc, k_visit, k_idx_dx, k_idx_proc = jax.random.split(key, 5)

    # nn.Embedding default init: N(0, 1); zero the padding row (padding_idx).
    dx_table = jax.random.normal(k_dx, (vocab_sizes["dx_ints"] + 1, hidden),
                                 dtype=jnp.float32)
    dx_table = dx_table.at[vocab_sizes["dx_ints"]].set(0.0)
    proc_table = jax.random.normal(k_proc, (vocab_sizes["proc_ints"] + 1, hidden),
                                   dtype=jnp.float32)
    proc_table = proc_table.at[vocab_sizes["proc_ints"]].set(0.0)
    visit_table = jax.random.normal(k_visit, (1, hidden), dtype=jnp.float32)

    params = {
        "dx_table": dx_table,
        "proc_table": proc_table,
        "visit_table": visit_table,
        "ln_gamma": jnp.ones((hidden,), jnp.float32),   # nn.LayerNorm defaults
        "ln_beta": jnp.zeros((hidden,), jnp.float32),
    }

    # Token ids in [0, vocab]; the value `vocab` is the padding index.
    dx_ids = jax.random.randint(k_idx_dx, (batch, max_dx_len), 0,
                                vocab_sizes["dx_ints"] + 1, dtype=jnp.int32)
    proc_ids = jax.random.randint(k_idx_proc, (batch, max_proc_len), 0,
                                  vocab_sizes["proc_ints"] + 1, dtype=jnp.int32)
    features = {"dx_ints": dx_ids, "proc_ints": proc_ids}

    # Pure-JAX reference.
    ref_dx = _reference_embed_layernorm(dx_ids, dx_table,
                                        params["ln_gamma"], params["ln_beta"])
    ref_proc = _reference_embed_layernorm(proc_ids, proc_table,
                                          params["ln_gamma"], params["ln_beta"])
    ref_visit = _reference_embed_layernorm(jnp.zeros((batch, 1), jnp.int32),
                                           visit_table,
                                           params["ln_gamma"], params["ln_beta"])

    # Exercise both code paths: VMEM-resident fast path and HBM-DMA fallback.
    for force_hbm in (False, True):
        prepared = prepare_params(params, force_hbm_path=force_hbm)
        embeddings, masks = feature_embedder_forward(features, prepared,
                                                     feature_keys)
        jax.block_until_ready(embeddings)
        jax.block_until_ready(masks)

        assert embeddings["dx_ints"].shape == (batch, max_dx_len, hidden)
        assert embeddings["proc_ints"].shape == (batch, max_proc_len, hidden)
        assert embeddings["visit"].shape == (batch, 1, hidden)
        assert masks["visit"].shape == (batch, 1)
        assert jnp.allclose(embeddings["dx_ints"], ref_dx, atol=1e-4), force_hbm
        assert jnp.allclose(embeddings["proc_ints"], ref_proc, atol=1e-4), force_hbm
        assert jnp.allclose(embeddings["visit"], ref_visit, atol=1e-4), force_hbm

    print("KERNEL_OK")
</pallas_src>

<mosaic_0001>
module attributes {stable_mosaic.version = 11 : i64} {
  func.func @_resident_gather_ln_kernel(%arg0: i32, %arg1: memref<32xi32, #tpu.memory_space<smem>>, %arg2: memref<56x128xf32, #tpu.memory_space<vmem>>, %arg3: memref<1x128xf32, #tpu.memory_space<vmem>>, %arg4: memref<1x128xf32, #tpu.memory_space<vmem>>, %arg5: memref<32x128xf32, #tpu.memory_space<vmem>>, %arg6: memref<32x128xf32, #tpu.memory_space<vmem>>) attributes {dimension_semantics = [#tpu.dimension_semantics<parallel>], iteration_bounds = array<i64: 1>, scalar_prefetch = 1 : i64, scratch_operands = 1 : i64, tpu.core_type = #tpu.core_type<tc>, window_params = [{pipeline_mode = #tpu.pipeline_mode<synchronous>, transform_indices = @transform_0, window_bounds = array<i64: 56, 128>}, {pipeline_mode = #tpu.pipeline_mode<synchronous>, transform_indices = @transform_1, window_bounds = array<i64: 1, 128>}, {pipeline_mode = #tpu.pipeline_mode<synchronous>, transform_indices = @transform_2, window_bounds = array<i64: 1, 128>}, {transform_indices = @transform_3, window_bounds = array<i64: 32, 128>}]} {
    %c32_i32 = arith.constant 32 : i32
    %0 = arith.muli %arg0, %c32_i32 : i32
    %c0_i32 = arith.constant 0 : i32
    %1 = arith.addi %0, %c0_i32 : i32
    %2 = arith.index_cast %1 : i32 to index
    %3 = memref.load %arg1[%2] : memref<32xi32, #tpu.memory_space<smem>>
    %4 = arith.index_cast %3 : i32 to index
    %c0 = arith.constant 0 : index
    %5 = vector.load %arg2[%4, %c0] : memref<56x128xf32, #tpu.memory_space<vmem>>, vector<1x128xf32>
    %c0_0 = arith.constant 0 : index
    %c0_1 = arith.constant 0 : index
    %6 = vector.load %arg6[%c0_0, %c0_1] : memref<32x128xf32, #tpu.memory_space<vmem>>, vector<1x128xf32>
    tpu.vector_store %arg6[%c0_0, %c0_1], %5 {strides = array<i32>} : memref<32x128xf32, #tpu.memory_space<vmem>>, vector<1x128xf32>,
    %c1_i32 = arith.constant 1 : i32
    %7 = arith.addi %0, %c1_i32 : i32
    %8 = arith.index_cast %7 : i32 to index
    %9 = memref.load %arg1[%8] : memref<32xi32, #tpu.memory_space<smem>>
    %10 = arith.index_cast %9 : i32 to index
    %c0_2 = arith.constant 0 : index
    %11 = vector.load %arg2[%10, %c0_2] : memref<56x128xf32, #tpu.memory_space<vmem>>, vector<1x128xf32>
    %c1 = arith.constant 1 : index
    %c0_3 = arith.constant 0 : index
    %12 = vector.load %arg6[%c1, %c0_3] : memref<32x128xf32, #tpu.memory_space<vmem>>, vector<1x128xf32>
    tpu.vector_store %arg6[%c1, %c0_3], %11 {strides = array<i32>} : memref<32x128xf32, #tpu.memory_space<vmem>>, vector<1x128xf32>,
    %c2_i32 = arith.constant 2 : i32
    %13 = arith.addi %0, %c2_i32 : i32
    %14 = arith.index_cast %13 : i32 to index
    %15 = memref.load %arg1[%14] : memref<32xi32, #tpu.memory_space<smem>>
    %16 = arith.index_cast %15 : i32 to index
    %c0_4 = arith.constant 0 : index
    %17 = vector.load %arg2[%16, %c0_4] : memref<56x128xf32, #tpu.memory_space<vmem>>, vector<1x128xf32>
    %c2 = arith.constant 2 : index
    %c0_5 = arith.constant 0 : index
    %18 = vector.load %arg6[%c2, %c0_5] : memref<32x128xf32, #tpu.memory_space<vmem>>, vector<1x128xf32>
    tpu.vector_store %arg6[%c2, %c0_5], %17 {strides = array<i32>} : memref<32x128xf32, #tpu.memory_space<vmem>>, vector<1x128xf32>,
    %c3_i32 = arith.constant 3 : i32
    %19 = arith.addi %0, %c3_i32 : i32
    %20 = arith.index_cast %19 : i32 to index
    %21 = memref.load %arg1[%20] : memref<32xi32, #tpu.memory_space<smem>>
    %22 = arith.index_cast %21 : i32 to index
    %c0_6 = arith.constant 0 : index
    %23 = vector.load %arg2[%22, %c0_6] : memref<56x128xf32, #tpu.memory_space<vmem>>, vector<1x128xf32>
    %c3 = arith.constant 3 : index
    %c0_7 = arith.constant 0 : index
    %24 = vector.load %arg6[%c3, %c0_7] : memref<32x128xf32, #tpu.memory_space<vmem>>, vector<1x128xf32>
    tpu.vector_store %arg6[%c3, %c0_7], %23 {strides = array<i32>} : memref<32x128xf32, #tpu.memory_space<vmem>>, vector<1x128xf32>,
    %c4_i32 = arith.constant 4 : i32
    %25 = arith.addi %0, %c4_i32 : i32
    %26 = arith.index_cast %25 : i32 to index
    %27 = memref.load %arg1[%26] : memref<32xi32, #tpu.memory_space<smem>>
    %28 = arith.index_cast %27 : i32 to index
    %c0_8 = arith.constant 0 : index
    %29 = vector.load %arg2[%28, %c0_8] : memref<56x128xf32, #tpu.memory_space<vmem>>, vector<1x128xf32>
    %c4 = arith.constant 4 : index
    %c0_9 = arith.constant 0 : index
    %30 = vector.load %arg6[%c4, %c0_9] : memref<32x128xf32, #tpu.memory_space<vmem>>, vector<1x128xf32>
    tpu.vector_store %arg6[%c4, %c0_9], %29 {strides = array<i32>} : memref<32x128xf32, #tpu.memory_space<vmem>>, vector<1x128xf32>,
    %c5_i32 = arith.constant 5 : i32
    %31 = arith.addi %0, %c5_i32 : i32
    %32 = arith.index_cast %31 : i32 to index
    %33 = memref.load %arg1[%32] : memref<32xi32, #tpu.memory_space<smem>>
    %34 = arith.index_cast %33 : i32 to index
    %c0_10 = arith.constant 0 : index
    %35 = vector.load %arg2[%34, %c0_10] : memref<56x128xf32, #tpu.memory_space<vmem>>, vector<1x128xf32>
    %c5 = arith.constant 5 : index
    %c0_11 = arith.constant 0 : index
    %36 = vector.load %arg6[%c5, %c0_11] : memref<32x128xf32, #tpu.memory_space<vmem>>, vector<1x128xf32>
    tpu.vector_store %arg6[%c5, %c0_11], %35 {strides = array<i32>} : memref<32x128xf32, #tpu.memory_space<vmem>>, vector<1x128xf32>,
    %c6_i32 = arith.constant 6 : i32
    %37 = arith.addi %0, %c6_i32 : i32
    %38 = arith.index_cast %37 : i32 to index
    %39 = memref.load %arg1[%38] : memref<32xi32, #tpu.memory_space<smem>>
    %40 = arith.index_cast %39 : i32 to index
    %c0_12 = arith.constant 0 : index
    %41 = vector.load %arg2[%40, %c0_12] : memref<56x128xf32, #tpu.memory_space<vmem>>, vector<1x128xf32>
    %c6 = arith.constant 6 : index
    %c0_13 = arith.constant 0 : index
    %42 = vector.load %arg6[%c6, %c0_13] : memref<32x128xf32, #tpu.memory_space<vmem>>, vector<1x128xf32>
    tpu.vector_store %arg6[%c6, %c0_13], %41 {strides = array<i32>} : memref<32x128xf32, #tpu.memory_space<vmem>>, vector<1x128xf32>,
    %c7_i32 = arith.constant 7 : i32
    %43 = arith.addi %0, %c7_i32 : i32
    %44 = arith.index_cast %43 : i32 to index
    %45 = memref.load %arg1[%44] : memref<32xi32, #tpu.memory_space<smem>>
    %46 = arith.index_cast %45 : i32 to index
    %c0_14 = arith.constant 0 : index
    %47 = vector.load %arg2[%46, %c0_14] : memref<56x128xf32, #tpu.memory_space<vmem>>, vector<1x128xf32>
    %c7 = arith.constant 7 : index
    %c0_15 = arith.constant 0 : index
    %48 = vector.load %arg6[%c7, %c0_15] : memref<32x128xf32, #tpu.memory_space<vmem>>, vector<1x128xf32>
    tpu.vector_store %arg6[%c7, %c0_15], %47 {strides = array<i32>} : memref<32x128xf32, #tpu.memory_space<vmem>>, vector<1x128xf32>,
    %c8_i32 = arith.constant 8 : i32
    %49 = arith.addi %0, %c8_i32 : i32
    %50 = arith.index_cast %49 : i32 to index
    %51 = memref.load %arg1[%50] : memref<32xi32, #tpu.memory_space<smem>>
    %52 = arith.index_cast %51 : i32 to index
    %c0_16 = arith.constant 0 : index
    %53 = vector.load %arg2[%52, %c0_16] : memref<56x128xf32, #tpu.memory_space<vmem>>, vector<1x128xf32>
    %c8 = arith.constant 8 : index
    %c0_17 = arith.constant 0 : index
    %54 = vector.load %arg6[%c8, %c0_17] : memref<32x128xf32, #tpu.memory_space<vmem>>, vector<1x128xf32>
    tpu.vector_store %arg6[%c8, %c0_17], %53 {strides = array<i32>} : memref<32x128xf32, #tpu.memory_space<vmem>>, vector<1x128xf32>,
    %c9_i32 = arith.constant 9 : i32
    %55 = arith.addi %0, %c9_i32 : i32
    %56 = arith.index_cast %55 : i32 to index
    %57 = memref.load %arg1[%56] : memref<32xi32, #tpu.memory_space<smem>>
    %58 = arith.index_cast %57 : i32 to index
    %c0_18 = arith.constant 0 : index
    %59 = vector.load %arg2[%58, %c0_18] : memref<56x128xf32, #tpu.memory_space<vmem>>, vector<1x128xf32>
    %c9 = arith.constant 9 : index
    %c0_19 = arith.constant 0 : index
    %60 = vector.load %arg6[%c9, %c0_19] : memref<32x128xf32, #tpu.memory_space<vmem>>, vector<1x128xf32>
    tpu.vector_store %arg6[%c9, %c0_19], %59 {strides = array<i32>} : memref<32x128xf32, #tpu.memory_space<vmem>>, vector<1x128xf32>,
    %c10_i32 = arith.constant 10 : i32
    %61 = arith.addi %0, %c10_i32 : i32
    %62 = arith.index_cast %61 : i32 to index
    %63 = memref.load %arg1[%62] : memref<32xi32, #tpu.memory_space<smem>>
    %64 = arith.index_cast %63 : i32 to index
    %c0_20 = arith.constant 0 : index
    %65 = vector.load %arg2[%64, %c0_20] : memref<56x128xf32, #tpu.memory_space<vmem>>, vector<1x128xf32>
    %c10 = arith.constant 10 : index
    %c0_21 = arith.constant 0 : index
    %66 = vector.load %arg6[%c10, %c0_21] : memref<32x128xf32, #tpu.memory_space<vmem>>, vector<1x128xf32>
    tpu.vector_store %arg6[%c10, %c0_21], %65 {strides = array<i32>} : memref<32x128xf32, #tpu.memory_space<vmem>>, vector<1x128xf32>,
    %c11_i32 = arith.constant 11 : i32
    %67 = arith.addi %0, %c11_i32 : i32
    %68 = arith.index_cast %67 : i32 to index
    %69 = memref.load %arg1[%68] : memref<32xi32, #tpu.memory_space<smem>>
    %70 = arith.index_cast %69 : i32 to index
    %c0_22 = arith.constant 0 : index
    %71 = vector.load %arg2[%70, %c0_22] : memref<56x128xf32, #tpu.memory_space<vmem>>, vector<1x128xf32>
    %c11 = arith.constant 11 : index
    %c0_23 = arith.constant 0 : index
    %72 = vector.load %arg6[%c11, %c0_23] : memref<32x128xf32, #tpu.memory_space<vmem>>, vector<1x128xf32>
    tpu.vector_store %arg6[%c11, %c0_23], %71 {strides = array<i32>} : memref<32x128xf32, #tpu.memory_space<vmem>>, vector<1x128xf32>,
    %c12_i32 = arith.constant 12 : i32
    %73 = arith.addi %0, %c12_i32 : i32
    %74 = arith.index_cast %73 : i32 to index
    %75 = memref.load %arg1[%74] : memref<32xi32, #tpu.memory_space<smem>>
    %76 = arith.index_cast %75 : i32 to index
    %c0_24 = arith.constant 0 : index
    %77 = vector.load %arg2[%76, %c0_24] : memref<56x128xf32, #tpu.memory_space<vmem>>, vector<1x128xf32>
    %c12 = arith.constant 12 : index
    %c0_25 = arith.constant 0 : index
    %78 = vector.load %arg6[%c12, %c0_25] : memref<32x128xf32, #tpu.memory_space<vmem>>, vector<1x128xf32>
    tpu.vector_store %arg6[%c12, %c0_25], %77 {strides = array<i32>} : memref<32x128xf32, #tpu.memory_space<vmem>>, vector<1x128xf32>,
    %c13_i32 = arith.constant 13 : i32
    %79 = arith.addi %0, %c13_i32 : i32
    %80 = arith.index_cast %79 : i32 to index
    %81 = memref.load %arg1[%80] : memref<32xi32, #tpu.memory_space<smem>>
    %82 = arith.index_cast %81 : i32 to index
    %c0_26 = arith.constant 0 : index
    %83 = vector.load %arg2[%82, %c0_26] : memref<56x128xf32, #tpu.memory_space<vmem>>, vector<1x128xf32>
    %c13 = arith.constant 13 : index
    %c0_27 = arith.constant 0 : index
    %84 = vector.load %arg6[%c13, %c0_27] : memref<32x128xf32, #tpu.memory_space<vmem>>, vector<1x128xf32>
    tpu.vector_store %arg6[%c13, %c0_27], %83 {strides = array<i32>} : memref<32x128xf32, #tpu.memory_space<vmem>>, vector<1x128xf32>,
    %c14_i32 = arith.constant 14 : i32
    %85 = arith.addi %0, %c14_i32 : i32
    %86 = arith.index_cast %85 : i32 to index
    %87 = memref.load %arg1[%86] : memref<32xi32, #tpu.memory_space<smem>>
    %88 = arith.index_cast %87 : i32 to index
    %c0_28 = arith.constant 0 : index
    %89 = vector.load %arg2[%88, %c0_28] : memref<56x128xf32, #tpu.memory_space<vmem>>, vector<1x128xf32>
    %c14 = arith.constant 14 : index
    %c0_29 = arith.constant 0 : index
    %90 = vector.load %arg6[%c14, %c0_29] : memref<32x128xf32, #tpu.memory_space<vmem>>, vector<1x128xf32>
    tpu.vector_store %arg6[%c14, %c0_29], %89 {strides = array<i32>} : memref<32x128xf32, #tpu.memory_space<vmem>>, vector<1x128xf32>,
    %c15_i32 = arith.constant 15 : i32
    %91 = arith.addi %0, %c15_i32 : i32
    %92 = arith.index_cast %91 : i32 to index
    %93 = memref.load %arg1[%92] : memref<32xi32, #tpu.memory_space<smem>>
    %94 = arith.index_cast %93 : i32 to index
    %c0_30 = arith.constant 0 : index
    %95 = vector.load %arg2[%94, %c0_30] : memref<56x128xf32, #tpu.memory_space<vmem>>, vector<1x128xf32>
    %c15 = arith.constant 15 : index
    %c0_31 = arith.constant 0 : index
    %96 = vector.load %arg6[%c15, %c0_31] : memref<32x128xf32, #tpu.memory_space<vmem>>, vector<1x128xf32>
    tpu.vector_store %arg6[%c15, %c0_31], %95 {strides = array<i32>} : memref<32x128xf32, #tpu.memory_space<vmem>>, vector<1x128xf32>,
    %c16_i32 = arith.constant 16 : i32
    %97 = arith.addi %0, %c16_i32 : i32
    %98 = arith.index_cast %97 : i32 to index
    %99 = memref.load %arg1[%98] : memref<32xi32, #tpu.memory_space<smem>>
    %100 = arith.index_cast %99 : i32 to index
    %c0_32 = arith.constant 0 : index
    %101 = vector.load %arg2[%100, %c0_32] : memref<56x128xf32, #tpu.memory_space<vmem>>, vector<1x128xf32>
    %c16 = arith.constant 16 : index
    %c0_33 = arith.constant 0 : index
    %102 = vector.load %arg6[%c16, %c0_33] : memref<32x128xf32, #tpu.memory_space<vmem>>, vector<1x128xf32>
    tpu.vector_store %arg6[%c16, %c0_33], %101 {strides = array<i32>} : memref<32x128xf32, #tpu.memory_space<vmem>>, vector<1x128xf32>,
    %c17_i32 = arith.constant 17 : i32
    %103 = arith.addi %0, %c17_i32 : i32
    %104 = arith.index_cast %103 : i32 to index
    %105 = memref.load %arg1[%104] : memref<32xi32, #tpu.memory_space<smem>>
    %106 = arith.index_cast %105 : i32 to index
    %c0_34 = arith.constant 0 : index
    %107 = vector.load %arg2[%106, %c0_34] : memref<56x128xf32, #tpu.memory_space<vmem>>, vector<1x128xf32>
    %c17 = arith.constant 17 : index
    %c0_35 = arith.constant 0 : index
    %108 = vector.load %arg6[%c17, %c0_35] : memref<32x128xf32, #tpu.memory_space<vmem>>, vector<1x128xf32>
    tpu.vector_store %arg6[%c17, %c0_35], %107 {strides = array<i32>} : memref<32x128xf32, #tpu.memory_space<vmem>>, vector<1x128xf32>,
    %c18_i32 = arith.constant 18 : i32
    %109 = arith.addi %0, %c18_i32 : i32
    %110 = arith.index_cast %109 : i32 to index
    %111 = memref.load %arg1[%110] : memref<32xi32, #tpu.memory_space<smem>>
    %112 = arith.index_cast %111 : i32 to index
    %c0_36 = arith.constant 0 : index
    %113 = vector.load %arg2[%112, %c0_36] : memref<56x128xf32, #tpu.memory_space<vmem>>, vector<1x128xf32>
    %c18 = arith.constant 18 : index
    %c0_37 = arith.constant 0 : index
    %114 = vector.load %arg6[%c18, %c0_37] : memref<32x128xf32, #tpu.memory_space<vmem>>, vector<1x128xf32>
    tpu.vector_store %arg6[%c18, %c0_37], %113 {strides = array<i32>} : memref<32x128xf32, #tpu.memory_space<vmem>>, vector<1x128xf32>,
    %c19_i32 = arith.constant 19 : i32
    %115 = arith.addi %0, %c19_i32 : i32
    %116 = arith.index_cast %115 : i32 to index
    %117 = memref.load %arg1[%116] : memref<32xi32, #tpu.memory_space<smem>>
    %118 = arith.index_cast %117 : i32 to index
    %c0_38 = arith.constant 0 : index
    %119 = vector.load %arg2[%118, %c0_38] : memref<56x128xf32, #tpu.memory_space<vmem>>, vector<1x128xf32>
    %c19 = arith.constant 19 : index
    %c0_39 = arith.constant 0 : index
    %120 = vector.load %arg6[%c19, %c0_39] : memref<32x128xf32, #tpu.memory_space<vmem>>, vector<1x128xf32>
    tpu.vector_store %arg6[%c19, %c0_39], %119 {strides = array<i32>} : memref<32x128xf32, #tpu.memory_space<vmem>>, vector<1x128xf32>,
    %c20_i32 = arith.constant 20 : i32
    %121 = arith.addi %0, %c20_i32 : i32
    %122 = arith.index_cast %121 : i32 to index
    %123 = memref.load %arg1[%122] : memref<32xi32, #tpu.memory_space<smem>>
    %124 = arith.index_cast %123 : i32 to index
    %c0_40 = arith.constant 0 : index
    %125 = vector.load %arg2[%124, %c0_40] : memref<56x128xf32, #tpu.memory_space<vmem>>, vector<1x128xf32>
    %c20 = arith.constant 20 : index
    %c0_41 = arith.constant 0 : index
    %126 = vector.load %arg6[%c20, %c0_41] : memref<32x128xf32, #tpu.memory_space<vmem>>, vector<1x128xf32>
    tpu.vector_store %arg6[%c20, %c0_41], %125 {strides = array<i32>} : memref<32x128xf32, #tpu.memory_space<vmem>>, vector<1x128xf32>,
    %c21_i32 = arith.constant 21 : i32
    %127 = arith.addi %0, %c21_i32 : i32
    %128 = arith.index_cast %127 : i32 to index
    %129 = memref.load %arg1[%128] : memref<32xi32, #tpu.memory_space<smem>>
    %130 = arith.index_cast %129 : i32 to index
    %c0_42 = arith.constant 0 : index
    %131 = vector.load %arg2[%130, %c0_42] : memref<56x128xf32, #tpu.memory_space<vmem>>, vector<1x128xf32>
    %c21 = arith.constant 21 : index
    %c0_43 = arith.constant 0 : index
    %132 = vector.load %arg6[%c21, %c0_43] : memref<32x128xf32, #tpu.memory_space<vmem>>, vector<1x128xf32>
    tpu.vector_store %arg6[%c21, %c0_43], %131 {strides = array<i32>} : memref<32x128xf32, #tpu.memory_space<vmem>>, vector<1x128xf32>,
    %c22_i32 = arith.constant 22 : i32
    %133 = arith.addi %0, %c22_i32 : i32
    %134 = arith.index_cast %133 : i32 to index
    %135 = memref.load %arg1[%134] : memref<32xi32, #tpu.memory_space<smem>>
    %136 = arith.index_cast %135 : i32 to index
    %c0_44 = arith.constant 0 : index
    %137 = vector.load %arg2[%136, %c0_44] : memref<56x128xf32, #tpu.memory_space<vmem>>, vector<1x128xf32>
    %c22 = arith.constant 22 : index
    %c0_45 = arith.constant 0 : index
    %138 = vector.load %arg6[%c22, %c0_45] : memref<32x128xf32, #tpu.memory_space<vmem>>, vector<1x128xf32>
    tpu.vector_store %arg6[%c22, %c0_45], %137 {strides = array<i32>} : memref<32x128xf32, #tpu.memory_space<vmem>>, vector<1x128xf32>,
    %c23_i32 = arith.constant 23 : i32
    %139 = arith.addi %0, %c23_i32 : i32
    %140 = arith.index_cast %139 : i32 to index
    %141 = memref.load %arg1[%140] : memref<32xi32, #tpu.memory_space<smem>>
    %142 = arith.index_cast %141 : i32 to index
    %c0_46 = arith.constant 0 : index
    %143 = vector.load %arg2[%142, %c0_46] : memref<56x128xf32, #tpu.memory_space<vmem>>, vector<1x128xf32>
    %c23 = arith.constant 23 : index
    %c0_47 = arith.constant 0 : index
    %144 = vector.load %arg6[%c23, %c0_47] : memref<32x128xf32, #tpu.memory_space<vmem>>, vector<1x128xf32>
    tpu.vector_store %arg6[%c23, %c0_47], %143 {strides = array<i32>} : memref<32x128xf32, #tpu.memory_space<vmem>>, vector<1x128xf32>,
    %c24_i32 = arith.constant 24 : i32
    %145 = arith.addi %0, %c24_i32 : i32
    %146 = arith.index_cast %145 : i32 to index
    %147 = memref.load %arg1[%146] : memref<32xi32, #tpu.memory_space<smem>>
    %148 = arith.index_cast %147 : i32 to index
    %c0_48 = arith.constant 0 : index
    %149 = vector.load %arg2[%148, %c0_48] : memref<56x128xf32, #tpu.memory_space<vmem>>, vector<1x128xf32>
    %c24 = arith.constant 24 : index
    %c0_49 = arith.constant 0 : index
    %150 = vector.load %arg6[%c24, %c0_49] : memref<32x128xf32, #tpu.memory_space<vmem>>, vector<1x128xf32>
    tpu.vector_store %arg6[%c24, %c0_49], %149 {strides = array<i32>} : memref<32x128xf32, #tpu.memory_space<vmem>>, vector<1x128xf32>,
    %c25_i32 = arith.constant 25 : i32
    %151 = arith.addi %0, %c25_i32 : i32
    %152 = arith.index_cast %151 : i32 to index
    %153 = memref.load %arg1[%152] : memref<32xi32, #tpu.memory_space<smem>>
    %154 = arith.index_cast %153 : i32 to index
    %c0_50 = arith.constant 0 : index
    %155 = vector.load %arg2[%154, %c0_50] : memref<56x128xf32, #tpu.memory_space<vmem>>, vector<1x128xf32>
    %c25 = arith.constant 25 : index
    %c0_51 = arith.constant 0 : index
    %156 = vector.load %arg6[%c25, %c0_51] : memref<32x128xf32, #tpu.memory_space<vmem>>, vector<1x128xf32>
    tpu.vector_store %arg6[%c25, %c0_51], %155 {strides = array<i32>} : memref<32x128xf32, #tpu.memory_space<vmem>>, vector<1x128xf32>,
    %c26_i32 = arith.constant 26 : i32
    %157 = arith.addi %0, %c26_i32 : i32
    %158 = arith.index_cast %157 : i32 to index
    %159 = memref.load %arg1[%158] : memref<32xi32, #tpu.memory_space<smem>>
    %160 = arith.index_cast %159 : i32 to index
    %c0_52 = arith.constant 0 : index
    %161 = vector.load %arg2[%160, %c0_52] : memref<56x128xf32, #tpu.memory_space<vmem>>, vector<1x128xf32>
    %c26 = arith.constant 26 : index
    %c0_53 = arith.constant 0 : index
    %162 = vector.load %arg6[%c26, %c0_53] : memref<32x128xf32, #tpu.memory_space<vmem>>, vector<1x128xf32>
    tpu.vector_store %arg6[%c26, %c0_53], %161 {strides = array<i32>} : memref<32x128xf32, #tpu.memory_space<vmem>>, vector<1x128xf32>,
    %c27_i32 = arith.constant 27 : i32
    %163 = arith.addi %0, %c27_i32 : i32
    %164 = arith.index_cast %163 : i32 to index
    %165 = memref.load %arg1[%164] : memref<32xi32, #tpu.memory_space<smem>>
    %166 = arith.index_cast %165 : i32 to index
    %c0_54 = arith.constant 0 : index
    %167 = vector.load %arg2[%166, %c0_54] : memref<56x128xf32, #tpu.memory_space<vmem>>, vector<1x128xf32>
    %c27 = arith.constant 27 : index
    %c0_55 = arith.constant 0 : index
    %168 = vector.load %arg6[%c27, %c0_55] : memref<32x128xf32, #tpu.memory_space<vmem>>, vector<1x128xf32>
    tpu.vector_store %arg6[%c27, %c0_55], %167 {strides = array<i32>} : memref<32x128xf32, #tpu.memory_space<vmem>>, vector<1x128xf32>,
    %c28_i32 = arith.constant 28 : i32
    %169 = arith.addi %0, %c28_i32 : i32
    %170 = arith.index_cast %169 : i32 to index
    %171 = memref.load %arg1[%170] : memref<32xi32, #tpu.memory_space<smem>>
    %172 = arith.index_cast %171 : i32 to index
    %c0_56 = arith.constant 0 : index
    %173 = vector.load %arg2[%172, %c0_56] : memref<56x128xf32, #tpu.memory_space<vmem>>, vector<1x128xf32>
    %c28 = arith.constant 28 : index
    %c0_57 = arith.constant 0 : index
    %174 = vector.load %arg6[%c28, %c0_57] : memref<32x128xf32, #tpu.memory_space<vmem>>, vector<1x128xf32>
    tpu.vector_store %arg6[%c28, %c0_57], %173 {strides = array<i32>} : memref<32x128xf32, #tpu.memory_space<vmem>>, vector<1x128xf32>,
    %c29_i32 = arith.constant 29 : i32
    %175 = arith.addi %0, %c29_i32 : i32
    %176 = arith.index_cast %175 : i32 to index
    %177 = memref.load %arg1[%176] : memref<32xi32, #tpu.memory_space<smem>>
    %178 = arith.index_cast %177 : i32 to index
    %c0_58 = arith.constant 0 : index
    %179 = vector.load %arg2[%178, %c0_58] : memref<56x128xf32, #tpu.memory_space<vmem>>, vector<1x128xf32>
    %c29 = arith.constant 29 : index
    %c0_59 = arith.constant 0 : index
    %180 = vector.load %arg6[%c29, %c0_59] : memref<32x128xf32, #tpu.memory_space<vmem>>, vector<1x128xf32>
    tpu.vector_store %arg6[%c29, %c0_59], %179 {strides = array<i32>} : memref<32x128xf32, #tpu.memory_space<vmem>>, vector<1x128xf32>,
    %c30_i32 = arith.constant 30 : i32
    %181 = arith.addi %0, %c30_i32 : i32
    %182 = arith.index_cast %181 : i32 to index
    %183 = memref.load %arg1[%182] : memref<32xi32, #tpu.memory_space<smem>>
    %184 = arith.index_cast %183 : i32 to index
    %c0_60 = arith.constant 0 : index
    %185 = vector.load %arg2[%184, %c0_60] : memref<56x128xf32, #tpu.memory_space<vmem>>, vector<1x128xf32>
    %c30 = arith.constant 30 : index
    %c0_61 = arith.constant 0 : index
    %186 = vector.load %arg6[%c30, %c0_61] : memref<32x128xf32, #tpu.memory_space<vmem>>, vector<1x128xf32>
    tpu.vector_store %arg6[%c30, %c0_61], %185 {strides = array<i32>} : memref<32x128xf32, #tpu.memory_space<vmem>>, vector<1x128xf32>,
    %c31_i32 = arith.constant 31 : i32
    %187 = arith.addi %0, %c31_i32 : i32
    %188 = arith.index_cast %187 : i32 to index
    %189 = memref.load %arg1[%188] : memref<32xi32, #tpu.memory_space<smem>>
    %190 = arith.index_cast %189 : i32 to index
    %c0_62 = arith.constant 0 : index
    %191 = vector.load %arg2[%190, %c0_62] : memref<56x128xf32, #tpu.memory_space<vmem>>, vector<1x128xf32>
    %c31 = arith.constant 31 : index
    %c0_63 = arith.constant 0 : index
    %192 = vector.load %arg6[%c31, %c0_63] : memref<32x128xf32, #tpu.memory_space<vmem>>, vector<1x128xf32>
    tpu.vector_store %arg6[%c31, %c0_63], %191 {strides = array<i32>} : memref<32x128xf32, #tpu.memory_space<vmem>>, vector<1x128xf32>,
    %c0_64 = arith.constant 0 : index
    %c0_65 = arith.constant 0 : index
    %193 = vector.load %arg6[%c0_64, %c0_65] : memref<32x128xf32, #tpu.memory_space<vmem>>, vector<32x128xf32>
    %c0_66 = arith.constant 0 : index
    %c0_67 = arith.constant 0 : index
    %194 = vector.load %arg3[%c0_66, %c0_67] : memref<1x128xf32, #tpu.memory_space<vmem>>, vector<1x128xf32>
    %c0_68 = arith.constant 0 : index
    %c0_69 = arith.constant 0 : index
    %195 = vector.load %arg4[%c0_68, %c0_69] : memref<1x128xf32, #tpu.memory_space<vmem>>, vector<1x128xf32>
    %cst = arith.constant dense<0.000000e+00> : vector<32xf32>
    %196 = vector.multi_reduction <add>, %193, %cst [1] : vector<32x128xf32> to vector<32xf32>
    %197 = vector.shape_cast %196 : vector<32xf32> to vector<32x1xf32>
    %cst_70 = arith.constant 3.125000e-02 : f32
    %198 = vector.broadcast %cst_70 : f32 to vector<32x1xf32>
    %199 = arith.mulf %197, %198 : vector<32x1xf32>
    %200 = tpu.iota {dimensions = array<i32: 1>} : vector<32x128xi32>
    %c32_i32_71 = arith.constant 32 : i32
    %201 = vector.broadcast %c32_i32_71 : i32 to vector<32x128xi32>
    %202 = arith.cmpi slt, %200, %201 : vector<32x128xi32>
    %203 = vector.broadcast %199 : vector<32x1xf32> to vector<32x128xf32>
    %204 = arith.subf %193, %203 : vector<32x128xf32>
    %cst_72 = arith.constant 0.000000e+00 : f32
    %205 = vector.broadcast %cst_72 : f32 to vector<32x128xf32>
    %206 = arith.select %202, %204, %205 : vector<32x128xi1>, vector<32x128xf32>
    %207 = arith.mulf %206, %206 : vector<32x128xf32>
    %cst_73 = arith.constant dense<0.000000e+00> : vector<32xf32>
    %208 = vector.multi_reduction <add>, %207, %cst_73 [1] : vector<32x128xf32> to vector<32xf32>
    %209 = vector.shape_cast %208 : vector<32xf32> to vector<32x1xf32>
    %cst_74 = arith.constant 3.125000e-02 : f32
    %210 = vector.broadcast %cst_74 : f32 to vector<32x1xf32>
    %211 = arith.mulf %209, %210 : vector<32x1xf32>
    %cst_75 = arith.constant 9.99999974E-6 : f32
    %212 = vector.broadcast %cst_75 : f32 to vector<32x1xf32>
    %213 = arith.addf %211, %212 : vector<32x1xf32>
    %214 = math.rsqrt %213 : vector<32x1xf32>
    %215 = vector.broadcast %214 : vector<32x1xf32> to vector<32x128xf32>
    %216 = arith.mulf %206, %215 : vector<32x128xf32>
    %217 = vector.broadcast %194 : vector<1x128xf32> to vector<32x128xf32>
    %218 = arith.mulf %216, %217 : vector<32x128xf32>
    %219 = vector.broadcast %195 : vector<1x128xf32> to vector<32x128xf32>
    %220 = arith.addf %218, %219 : vector<32x128xf32>
    %c0_76 = arith.constant 0 : index
    %c0_77 = arith.constant 0 : index
    %221 = vector.load %arg5[%c0_76, %c0_77] : memref<32x128xf32, #tpu.memory_space<vmem>>, vector<32x128xf32>
    tpu.vector_store %arg5[%c0_76, %c0_77], %220 {strides = array<i32>} : memref<32x128xf32, #tpu.memory_space<vmem>>, vector<32x128xf32>,
    return
  }
  func.func @transform_0(%arg0: i32, %arg1: memref<32xi32, #tpu.memory_space<smem>>) -> (i32, i32) {
    %c0_i32 = arith.constant 0 : i32
    %c0_i32_0 = arith.constant 0 : i32
    %c0_i32_1 = arith.constant 0 : i32
    return %c0_i32, %c0_i32_0 : i32, i32
  }
  func.func @transform_1(%arg0: i32, %arg1: memref<32xi32, #tpu.memory_space<smem>>) -> (i32, i32) {
    %c0_i32 = arith.constant 0 : i32
    %c0_i32_0 = arith.constant 0 : i32
    %c0_i32_1 = arith.constant 0 : i32
    return %c0_i32, %c0_i32_0 : i32, i32
  }
  func.func @transform_2(%arg0: i32, %arg1: memref<32xi32, #tpu.memory_space<smem>>) -> (i32, i32) {
    %c0_i32 = arith.constant 0 : i32
    %c0_i32_0 = arith.constant 0 : i32
    %c0_i32_1 = arith.constant 0 : i32
    return %c0_i32, %c0_i32_0 : i32, i32
  }
  func.func @transform_3(%arg0: i32, %arg1: memref<32xi32, #tpu.memory_space<smem>>) -> (i32, i32) {
    %c0_i32 = arith.constant 0 : i32
    %c0_i32_0 = arith.constant 0 : i32
    return %arg0, %c0_i32 : i32, i32
  }
}

</mosaic_0001>

<llo_original>
// kernel: _fused_embed_layernorm.1
$region0: #{_fused_embed_layernorm.1}
  #allocation0 [shape = 'u32[]', space=smem, size = 0x4, offset = 0x4, fixed_abs, tag = 'smem constant byte address 0x4 - core index']
  #allocation1 [shape = 'u32[144,128]{1,0:T(1,128)}', space=vmem, size = 0x12000, scoped, tag = 'internal scratch']
  #allocation2 [shape = 'f32[32,128]{1,0:T(8,128)}', space=vmem, size = 0x4000, scoped, tag = 'scratch operand']
  #allocation3 [shape = 's32[1]{0}', space=sflag, size = 0x4, scoped, tag = 'scoped memory for _fused_embed_layernorm.1']
  #allocation4 [shape = 'u8[512]{0}', space=smem, size = 0x200, scoped, tag = 'prefetched SMEM operand 0']
  %s0 = inlined_call_operand.vmem [shape: s32[32], index: 0, kind: input, shape index: {}]
  %s1 = inlined_call_operand.hbm [shape: f32[56,128], index: 1, kind: input, shape index: {}]
  %s2 = inlined_call_operand.vmem [shape: f32[1,128], index: 2, kind: input, shape index: {}]
  %s3 = inlined_call_operand.vmem [shape: f32[1,128], index: 3, kind: input, shape index: {}]
  %s4 = inlined_call_operand.hbm [shape: f32[32,128], index: 4, kind: output, shape index: {}]
  %s5 = sld [smem:[#allocation0]]
  $region26: #{_fused_embed_layernorm.1} parent=0
    _
  %s7 = ssub.s32 1, %s5
  %s8 = scalar_select 0, %s7, %s5
  %s9 = sshll.u32 %s0, 4
  %s10 = int_to_ptr.vmem [resolvable:$true] %s9
  %12 = dma.vmem_to_smem %s10, 16, [#allocation4], [#allocation3]
  %13 = dma.done [#allocation3], 16
  %14 = sfence
  $region1: #{_fused_embed_layernorm.1} parent=0
    #allocation5 [shape = 'u8[28672]{0}', space=vmem, size = 0x7000, scoped, tag = 'input window, operand 1, single buffered']
    #allocation6 [shape = 's32[1]{0}', space=sflag, size = 0x4, scoped, tag = 'scoped memory for _fused_embed_layernorm.1']
    #allocation7 [shape = 's32[1]{0}', space=sflag, size = 0x4, scoped, tag = 'scoped memory for _fused_embed_layernorm.1']
    #allocation8 [shape = 'u8[16384]{0}', space=vmem, size = 0x4000, scoped, tag = 'output window, operand 0, single buffered']
    %15 = vsyncpa [#allocation6], 0
    %16 = vsyncpa [#allocation7], 0
    // Predicated region
    $region2: #{_fused_embed_layernorm.1} parent=1 // pred_check
      _
    $region3: #{_fused_embed_layernorm.1} parent=1 // pred_check_branch
      %18 = sbr.rel (0) target = $region5
    $region4: #{_fused_embed_layernorm.1} parent=1 // pred_region
      %s20 = ssub.s32 896, 896
      %21 = vsyncadd [#allocation6], %s20
      %s22 = sshll.u32 [#allocation5], 4
      %s23 = int_to_ptr.vmem [resolvable:$true] %s22
      %28 = dma.hbm_to_vmem [thread:$0]  %s1, 896, %s23, [#allocation6], 128, 128, 8
    $region5: #{_fused_embed_layernorm.1} parent=1 // pred_fallthru
      _
    // Predicated region
    $region6: #{_fused_embed_layernorm.1} parent=1 // pred_check
      _
    $region7: #{_fused_embed_layernorm.1} parent=1 // pred_check_branch
      %30 = sbr.rel (0) target = $region9
    $region8: #{_fused_embed_layernorm.1} parent=1 // pred_region
      _
    $region9: #{_fused_embed_layernorm.1} parent=1 // pred_fallthru
      _
    // Predicated region
    $region10: #{_fused_embed_layernorm.1} parent=1 // pred_check
      _
    $region11: #{_fused_embed_layernorm.1} parent=1 // pred_check_branch
      %32 = sbr.rel (0) target = $region13
    $region12: #{_fused_embed_layernorm.1} parent=1 // pred_region
      _
    $region13: #{_fused_embed_layernorm.1} parent=1 // pred_fallthru
      _
    // Predicated region
    $region14: #{_fused_embed_layernorm.1} parent=1 // pred_check
      _
    $region15: #{_fused_embed_layernorm.1} parent=1 // pred_check_branch
      %34 = sbr.rel (0) target = $region17
    $region16: #{_fused_embed_layernorm.1} parent=1 // pred_region
      %35 = dma.done [#allocation6], 896
    $region17: #{_fused_embed_layernorm.1} parent=1 // pred_fallthru
      _
    %s36 = smul.u32 0, 32
    %s37 = sld [smem:[#allocation4 + %s36]]
    %s38 = scalar_lea.vmem [#allocation5], %s37
    %v39 = vld [vmem:[%s38] sm:$0x1]
    %40 = vst [vmem:[#allocation2] sm:$0x1] %v39
    %s41 = sadd.s32 %s36, 1
    %s42 = sld [smem:[#allocation4 + %s41]]
    %s43 = scalar_lea.vmem [#allocation5], %s42
    %v44 = vld [vmem:[%s43] sm:$0x1]
    %45 = vst [vmem:[#allocation2 + $0x1] sm:$0x1] %v44
    %s46 = sadd.s32 %s36, 2
    %s47 = sld [smem:[#allocation4 + %s46]]
    %s48 = scalar_lea.vmem [#allocation5], %s47
    %v49 = vld [vmem:[%s48] sm:$0x1]
    %50 = vst [vmem:[#allocation2 + $0x2] sm:$0x1] %v49
    %s51 = sadd.s32 %s36, 3
    %s52 = sld [smem:[#allocation4 + %s51]]
    %s53 = scalar_lea.vmem [#allocation5], %s52
    %v54 = vld [vmem:[%s53] sm:$0x1]
    %55 = vst [vmem:[#allocation2 + $0x3] sm:$0x1] %v54
    %s56 = sadd.s32 %s36, 4
    %s57 = sld [smem:[#allocation4 + %s56]]
    %s58 = scalar_lea.vmem [#allocation5], %s57
    %v59 = vld [vmem:[%s58] sm:$0x1]
    %60 = vst [vmem:[#allocation2 + $0x4] sm:$0x1] %v59
    %s61 = sadd.s32 %s36, 5
    %s62 = sld [smem:[#allocation4 + %s61]]
    %s63 = scalar_lea.vmem [#allocation5], %s62
    %v64 = vld [vmem:[%s63] sm:$0x1]
    %65 = vst [vmem:[#allocation2 + $0x5] sm:$0x1] %v64
    %s66 = sadd.s32 %s36, 6
    %s67 = sld [smem:[#allocation4 + %s66]]
    %s68 = scalar_lea.vmem [#allocation5], %s67
    %v69 = vld [vmem:[%s68] sm:$0x1]
    %70 = vst [vmem:[#allocation2 + $0x6] sm:$0x1] %v69
    %s71 = sadd.s32 %s36, 7
    %s72 = sld [smem:[#allocation4 + %s71]]
    %s73 = scalar_lea.vmem [#allocation5], %s72
    %v74 = vld [vmem:[%s73] sm:$0x1]
    %75 = vst [vmem:[#allocation2 + $0x7] sm:$0x1] %v74
    %s76 = sadd.s32 %s36, 8
    %s77 = sld [smem:[#allocation4 + %s76]]
    %s78 = scalar_lea.vmem [#allocation5], %s77
    %v79 = vld [vmem:[%s78] sm:$0x1]
    %80 = vst [vmem:[#allocation2 + $0x8] sm:$0x1] %v79
    %s81 = sadd.s32 %s36, 9
    %s82 = sld [smem:[#allocation4 + %s81]]
    %s83 = scalar_lea.vmem [#allocation5], %s82
    %v84 = vld [vmem:[%s83] sm:$0x1]
    %85 = vst [vmem:[#allocation2 + $0x9] sm:$0x1] %v84
    %s86 = sadd.s32 %s36, 10
    %s87 = sld [smem:[#allocation4 + %s86]]
    %s88 = scalar_lea.vmem [#allocation5], %s87
    %v89 = vld [vmem:[%s88] sm:$0x1]
    %90 = vst [vmem:[#allocation2 + $0xa] sm:$0x1] %v89
    %s91 = sadd.s32 %s36, 11
    %s92 = sld [smem:[#allocation4 + %s91]]
    %s93 = scalar_lea.vmem [#allocation5], %s92
    %v94 = vld [vmem:[%s93] sm:$0x1]
    %95 = vst [vmem:[#allocation2 + $0xb] sm:$0x1] %v94
    %s96 = sadd.s32 %s36, 12
    %s97 = sld [smem:[#allocation4 + %s96]]
    %s98 = scalar_lea.vmem [#allocation5], %s97
    %v99 = vld [vmem:[%s98] sm:$0x1]
    %100 = vst [vmem:[#allocation2 + $0xc] sm:$0x1] %v99
    %s101 = sadd.s32 %s36, 13
    %s102 = sld [smem:[#allocation4 + %s101]]
    %s103 = scalar_lea.vmem [#allocation5], %s102
    %v104 = vld [vmem:[%s103] sm:$0x1]
    %105 = vst [vmem:[#allocation2 + $0xd] sm:$0x1] %v104
    %s106 = sadd.s32 %s36, 14
    %s107 = sld [smem:[#allocation4 + %s106]]
    %s108 = scalar_lea.vmem [#allocation5], %s107
    %v109 = vld [vmem:[%s108] sm:$0x1]
    %110 = vst [vmem:[#allocation2 + $0xe] sm:$0x1] %v109
    %s111 = sadd.s32 %s36, 15
    %s112 = sld [smem:[#allocation4 + %s111]]
    %s113 = scalar_lea.vmem [#allocation5], %s112
    %v114 = vld [vmem:[%s113] sm:$0x1]
    %115 = vst [vmem:[#allocation2 + $0xf] sm:$0x1] %v114
    %s116 = sadd.s32 %s36, 16
    %s117 = sld [smem:[#allocation4 + %s116]]
    %s118 = scalar_lea.vmem [#allocation5], %s117
    %v119 = vld [vmem:[%s118] sm:$0x1]
    %120 = vst [vmem:[#allocation2 + $0x10] sm:$0x1] %v119
    %s121 = sadd.s32 %s36, 17
    %s122 = sld [smem:[#allocation4 + %s121]]
    %s123 = scalar_lea.vmem [#allocation5], %s122
    %v124 = vld [vmem:[%s123] sm:$0x1]
    %125 = vst [vmem:[#allocation2 + $0x11] sm:$0x1] %v124
    %s126 = sadd.s32 %s36, 18
    %s127 = sld [smem:[#allocation4 + %s126]]
    %s128 = scalar_lea.vmem [#allocation5], %s127
    %v129 = vld [vmem:[%s128] sm:$0x1]
    %130 = vst [vmem:[#allocation2 + $0x12] sm:$0x1] %v129
    %s131 = sadd.s32 %s36, 19
    %s132 = sld [smem:[#allocation4 + %s131]]
    %s133 = scalar_lea.vmem [#allocation5], %s132
    %v134 = vld [vmem:[%s133] sm:$0x1]
    %135 = vst [vmem:[#allocation2 + $0x13] sm:$0x1] %v134
    %s136 = sadd.s32 %s36, 20
    %s137 = sld [smem:[#allocation4 + %s136]]
    %s138 = scalar_lea.vmem [#allocation5], %s137
    %v139 = vld [vmem:[%s138] sm:$0x1]
    %140 = vst [vmem:[#allocation2 + $0x14] sm:$0x1] %v139
    %s141 = sadd.s32 %s36, 21
    %s142 = sld [smem:[#allocation4 + %s141]]
    %s143 = scalar_lea.vmem [#allocation5], %s142
    %v144 = vld [vmem:[%s143] sm:$0x1]
    %145 = vst [vmem:[#allocation2 + $0x15] sm:$0x1] %v144
    %s146 = sadd.s32 %s36, 22
    %s147 = sld [smem:[#allocation4 + %s146]]
    %s148 = scalar_lea.vmem [#allocation5], %s147
    %v149 = vld [vmem:[%s148] sm:$0x1]
    %150 = vst [vmem:[#allocation2 + $0x16] sm:$0x1] %v149
    %s151 = sadd.s32 %s36, 23
    %s152 = sld [smem:[#allocation4 + %s151]]
    %s153 = scalar_lea.vmem [#allocation5], %s152
    %v154 = vld [vmem:[%s153] sm:$0x1]
    %155 = vst [vmem:[#allocation2 + $0x17] sm:$0x1] %v154
    %s156 = sadd.s32 %s36, 24
    %s157 = sld [smem:[#allocation4 + %s156]]
    %s158 = scalar_lea.vmem [#allocation5], %s157
    %v159 = vld [vmem:[%s158] sm:$0x1]
    %160 = vst [vmem:[#allocation2 + $0x18] sm:$0x1] %v159
    %s161 = sadd.s32 %s36, 25
    %s162 = sld [smem:[#allocation4 + %s161]]
    %s163 = scalar_lea.vmem [#allocation5], %s162
    %v164 = vld [vmem:[%s163] sm:$0x1]
    %165 = vst [vmem:[#allocation2 + $0x19] sm:$0x1] %v164
    %s166 = sadd.s32 %s36, 26
    %s167 = sld [smem:[#allocation4 + %s166]]
    %s168 = scalar_lea.vmem [#allocation5], %s167
    %v169 = vld [vmem:[%s168] sm:$0x1]
    %170 = vst [vmem:[#allocation2 + $0x1a] sm:$0x1] %v169
    %s171 = sadd.s32 %s36, 27
    %s172 = sld [smem:[#allocation4 + %s171]]
    %s173 = scalar_lea.vmem [#allocation5], %s172
    %v174 = vld [vmem:[%s173] sm:$0x1]
    %175 = vst [vmem:[#allocation2 + $0x1b] sm:$0x1] %v174
    %s176 = sadd.s32 %s36, 28
    %s177 = sld [smem:[#allocation4 + %s176]]
    %s178 = scalar_lea.vmem [#allocation5], %s177
    %v179 = vld [vmem:[%s178] sm:$0x1]
    %180 = vst [vmem:[#allocation2 + $0x1c] sm:$0x1] %v179
    %s181 = sadd.s32 %s36, 29
    %s182 = sld [smem:[#allocation4 + %s181]]
    %s183 = scalar_lea.vmem [#allocation5], %s182
    %v184 = vld [vmem:[%s183] sm:$0x1]
    %185 = vst [vmem:[#allocation2 + $0x1d] sm:$0x1] %v184
    %s186 = sadd.s32 %s36, 30
    %s187 = sld [smem:[#allocation4 + %s186]]
    %s188 = scalar_lea.vmem [#allocation5], %s187
    %v189 = vld [vmem:[%s188] sm:$0x1]
    %190 = vst [vmem:[#allocation2 + $0x1e] sm:$0x1] %v189
    %s191 = sadd.s32 %s36, 31
    %s192 = sld [smem:[#allocation4 + %s191]]
    %s193 = scalar_lea.vmem [#allocation5], %s192
    %v194 = vld [vmem:[%s193] sm:$0x1]
    %195 = vst [vmem:[#allocation2 + $0x1f] sm:$0x1] %v194
    %v196 = vld [vmem:[#allocation2] sm:$0xff]
    %v197 = vld [vmem:[#allocation2 + $0x8] sm:$0xff]
    %v198 = vld [vmem:[#allocation2 + $0x10] sm:$0xff]
    %v199 = vld [vmem:[#allocation2 + $0x18] sm:$0xff]
    %v200 = vld [vmem:[%s2] sm:$0x1]
    %v201 = vld [vmem:[%s3] sm:$0x1]
    %202 = vadd.xlane.f32.xlu0 %v196
    %v203 = vpop.xlane.xlu0 %202
    %204 = vadd.xlane.f32.xlu0 %v197
    %v205 = vpop.xlane.xlu0 %204
    %206 = vadd.xlane.f32.xlu0 %v198
    %v207 = vpop.xlane.xlu0 %206
    %208 = vadd.xlane.f32.xlu0 %v199
    %v209 = vpop.xlane.xlu0 %208
    %v210 = vmul.f32 %v203, 0.03125
    %v211 = vmul.f32 %v205, 0.03125
    %v212 = vmul.f32 %v207, 0.03125
    %v213 = vmul.f32 %v209, 0.03125
    %v214 = vlaneseq
    %v215 = vand.u32 %v214, 127
    %vm216 = vcmp.lt.s32.totalorder %v215, 32
    %v217 = vsub.f32 %v196, %v210
    %v218 = vsub.f32 %v197, %v211
    %v219 = vsub.f32 %v198, %v212
    %v220 = vsub.f32 %v199, %v213
    %v221 = vsel %vm216, %v217, 0.0
    %v222 = vsel %vm216, %v218, 0.0
    %v223 = vsel %vm216, %v219, 0.0
    %v224 = vsel %vm216, %v220, 0.0
    %v225 = vmul.f32 %v221, %v221
    %v226 = vmul.f32 %v222, %v222
    %v227 = vmul.f32 %v223, %v223
    %v228 = vmul.f32 %v224, %v224
    %229 = vadd.xlane.f32.xlu0 %v225
    %v230 = vpop.xlane.xlu0 %229
    %231 = vadd.xlane.f32.xlu0 %v226
    %v232 = vpop.xlane.xlu0 %231
    %233 = vadd.xlane.f32.xlu0 %v227
    %v234 = vpop.xlane.xlu0 %233
    %235 = vadd.xlane.f32.xlu0 %v228
    %v236 = vpop.xlane.xlu0 %235
    %v237 = vmul.f32 %v230, 0.03125
    %v238 = vmul.f32 %v232, 0.03125
    %v239 = vmul.f32 %v234, 0.03125
    %v240 = vmul.f32 %v236, 0.03125
    %v241 = vadd.f32 %v237, 1e-05
    %v242 = vadd.f32 %v238, 1e-05
    %v243 = vadd.f32 %v239, 1e-05
    %v244 = vadd.f32 %v240, 1e-05
    %v245 = vrsqrt.pop %v241
    %v246 = vrsqrt.pop %v242
    %v247 = vrsqrt.pop %v243
    %v248 = vrsqrt.pop %v244
    %v249 = vmul.f32 %v221, %v245
    %v250 = vmul.f32 %v222, %v246
    %v251 = vmul.f32 %v223, %v247
    %v252 = vmul.f32 %v224, %v248
    %v254 = vlaneseq
    %v255 = vshrl.u32 %v254, 7
    %v256 = vsub.s32 0, %v255
    %v257 = vrot.slane %v200, %v256
    %v259 = vmul.f32 %v249, %v257
    %v260 = vmul.f32 %v250, %v257
    %v261 = vmul.f32 %v251, %v257
    %v262 = vmul.f32 %v252, %v257
    %v264 = vlaneseq
    %v265 = vshrl.u32 %v264, 7
    %v266 = vsub.s32 0, %v265
    %v267 = vrot.slane %v201, %v266
    %v269 = vadd.f32 %v259, %v267
    %v270 = vadd.f32 %v260, %v267
    %v271 = vadd.f32 %v261, %v267
    %v272 = vadd.f32 %v262, %v267
    %273 = vst [vmem:[#allocation8] sm:$0xff] %v269
    %274 = vst [vmem:[#allocation8 + $0x8] sm:$0xff] %v270
    %275 = vst [vmem:[#allocation8 + $0x10] sm:$0xff] %v271
    %276 = vst [vmem:[#allocation8 + $0x18] sm:$0xff] %v272
    // Predicated region
    $region18: #{_fused_embed_layernorm.1} parent=1 // pred_check
      _
    $region19: #{_fused_embed_layernorm.1} parent=1 // pred_check_branch
      %278 = sbr.rel (0) target = $region21
    $region20: #{_fused_embed_layernorm.1} parent=1 // pred_region
      %s280 = ssub.s32 512, 512
      %281 = vsyncadd [#allocation7], %s280
      %s282 = sshll.u32 [#allocation8], 4
      %s283 = int_to_ptr.vmem [resolvable:$true] %s282
      %288 = dma.vmem_to_hbm [thread:$0]  %s283, 512, %s4, [#allocation7], 128, 128, 8
    $region21: #{_fused_embed_layernorm.1} parent=1 // pred_fallthru
      _
    // Predicated region
    $region22: #{_fused_embed_layernorm.1} parent=1 // pred_check
      _
    $region23: #{_fused_embed_layernorm.1} parent=1 // pred_check_branch
      %290 = sbr.rel (0) target = $region25
    $region24: #{_fused_embed_layernorm.1} parent=1 // pred_region
      %291 = dma.done [#allocation7], 512
    $region25: #{_fused_embed_layernorm.1} parent=1 // pred_fallthru
      _
    %292 = vsyncpa [#allocation6], 1
    %293 = vsyncpa [#allocation7], 1

</llo_original>
